<compile_context>
chip_gen: v6e
topology: v6e:2x2x1
jax: 0.10.0
libtpu: 0.0.40
codegen_flags: <defaults>
</compile_context>

<pallas_src>
import jax
import jax.numpy as jnp
from jax import lax
from jax.experimental import pallas as pl
from jax.experimental.pallas import tpu as pltpu

# ---- model sizes (small, consistent with the module) -----------------------
B = 8            # batch (per branch)
T = 16           # max sequence length
VOCAB = 32       # vocabulary of the synthetic representation model
HID = 32         # representation_model.hid_dim
HID2 = 2 * HID   # predictor hidden width
BN_EPS = 1e-5    # nn.BatchNorm1d default eps
BB = 2 * B       # both Siamese branches stacked on the batch axis


# ---------------------------------------------------------------------------
# Fused Pallas kernel
# ---------------------------------------------------------------------------
def fused_siam_kernel(seq_ref, len_ref, emb_ref, wr_ref, br_ref,
                      w1_ref, b1_ref, w2_ref, b2_ref, out_ref):
    """Embedding (one-hot MXU matmul) -> masked mean pool -> Linear+tanh
    (representation) -> Linear (BN folded) -> ReLU -> Linear (predictor),
    for both branches stacked on the batch axis.

    seq_ref : (2B, T) int32      len_ref : (2B, 1) int32
    emb_ref : (V, H) f32         wr_ref  : (H, H) f32    br_ref : (1, H) f32
    w1_ref  : (H, 2H) f32        b1_ref  : (1, 2H) f32   (BN folded in)
    w2_ref  : (2H, H) f32        b2_ref  : (1, H) f32
    out_ref : (B, 4H) f32  lane-dense slab [z1 | z2 | p1 | p2]
    """
    seq = seq_ref[...]                                        # (2B, T) int32
    lengths = len_ref[...]                                    # (2B, 1) int32

    # Invalidate padded positions *before* the one-hot compare: token id -1
    # never matches any vocab index, so its one-hot row is all zeros and no
    # explicit (2B, T, V) mask multiply is needed.
    t_iota = lax.broadcasted_iota(jnp.int32, (BB, T), 1)
    seq_masked = jnp.where(t_iota < lengths, seq, -1)         # (2B, T)

    # One-hot encoding of the (masked) tokens — no XLA gather.
    tok_iota = lax.broadcasted_iota(jnp.int32, (BB, T, VOCAB), 2)
    one_hot = (tok_iota == seq_masked[:, :, None]).astype(jnp.float32)

    # Masked token counts -> masked-sum pooling is a single small MXU matmul:
    #   sum_t [t < len] * E[seq[b,t]] == counts[b,:] @ E
    counts = jnp.sum(one_hot, axis=1)                         # (2B, V)
    pooled = jnp.dot(counts, emb_ref[...],
                     preferred_element_type=jnp.float32)      # (2B, H)

    # Masked mean (length >= 1 guaranteed by the data pipeline).
    inv_len = pl.reciprocal(lengths.astype(jnp.float32), approx=True)
    pooled = pooled * inv_len

    # Representation head: Linear -> tanh.
    z = jnp.tanh(jnp.dot(pooled, wr_ref[...],
                         preferred_element_type=jnp.float32) + br_ref[...])

    # Predictor: Linear (BatchNorm1d eval folded into w1/b1) -> ReLU -> Linear.
    h = jnp.dot(z, w1_ref[...],
                preferred_element_type=jnp.float32) + b1_ref[...]     # (2B, 2H)
    h = jnp.maximum(h, 0.0)
    p = jnp.dot(h, w2_ref[...],
                preferred_element_type=jnp.float32) + b2_ref[...]     # (2B, H)

    # Lane-dense (8, 128) output slab: [z1 | z2 | p1 | p2].
    out_ref[...] = jnp.concatenate([z[:B], z[B:], p[:B], p[B:]], axis=-1)


# ---------------------------------------------------------------------------
# Wrapper
# ---------------------------------------------------------------------------
def smiles_siam_forward(seq_1, length_1, seq_2, length_2, params):
    """Mirrors SMILESSiam.forward (use_pp_prediction=False, use_fp_prediction=False)."""
    seq = jnp.concatenate([seq_1, seq_2], axis=0).astype(jnp.int32)       # (2B, T)
    lengths = jnp.concatenate([length_1, length_2],
                              axis=0).astype(jnp.int32)[:, None]          # (2B, 1)

    vmem = pl.BlockSpec(memory_space=pltpu.MemorySpace.VMEM)
    out = pl.pallas_call(
        fused_siam_kernel,
        out_shape=jax.ShapeDtypeStruct((B, 4 * HID), jnp.float32),
        in_specs=[vmem] * 9,
        out_specs=vmem,
    )(seq, lengths,
      params["emb_table"], params["wr"], params["br"],
      params["w1_folded"], params["b1_folded"], params["w2"], params["b2"])

    z1 = out[:, 0 * HID:1 * HID]
    z2 = out[:, 1 * HID:2 * HID]
    p1 = out[:, 2 * HID:3 * HID]
    p2 = out[:, 3 * HID:4 * HID]
    return {"p1": p1, "p2": p2, "z1": z1, "z2": z2}


smiles_siam_forward_jit = jax.jit(smiles_siam_forward)


# ---------------------------------------------------------------------------
# Deterministic parameter init (synthetic — not a checkpoint load)
# BatchNorm (eval) is folded into w1/b1 once, here.
# ---------------------------------------------------------------------------
def init_params(key):
    ks = jax.random.split(key, 10)
    p = {
        # synthetic representation model
        "emb_table": jax.random.normal(ks[0], (VOCAB, HID), jnp.float32) * 0.1,
        "wr": jax.random.normal(ks[1], (HID, HID), jnp.float32) * 0.1,
        "br": jax.random.normal(ks[2], (1, HID), jnp.float32) * 0.01,
        # predictor: Linear(H, 2H) -> BN(2H) -> ReLU -> Linear(2H, H)
        "w1": jax.random.normal(ks[3], (HID, HID2), jnp.float32) * 0.1,
        "b1": jax.random.normal(ks[4], (1, HID2), jnp.float32) * 0.01,
        "bn_gamma": 1.0 + 0.05 * jax.random.normal(ks[5], (1, HID2), jnp.float32),
        "bn_beta": 0.05 * jax.random.normal(ks[6], (1, HID2), jnp.float32),
        "bn_mean": 0.05 * jax.random.normal(ks[7], (1, HID2), jnp.float32),
        "bn_var": 1.0 + 0.1 * jnp.abs(jax.random.normal(ks[8], (1, HID2), jnp.float32)),
        "w2": jax.random.normal(ks[9], (HID2, HID), jnp.float32) * 0.1,
        "b2": jnp.zeros((1, HID), jnp.float32),
    }
    # Fold BatchNorm1d (eval mode) into the first predictor Linear (one-time).
    scale = p["bn_gamma"] / jnp.sqrt(p["bn_var"] + BN_EPS)              # (1, 2H)
    p["w1_folded"] = p["w1"] * scale                                    # (H, 2H)
    p["b1_folded"] = (p["b1"] - p["bn_mean"]) * scale + p["bn_beta"]    # (1, 2H)
    return p


# ---------------------------------------------------------------------------
# Pure-JAX reference (unfused, exact BN/divide) for a sanity check.
# ---------------------------------------------------------------------------
def reference_forward(seq_1, length_1, seq_2, length_2, params):
    def rep(seq, length):
        emb = params["emb_table"][seq]                               # (B, T, H)
        mask = (jnp.arange(T)[None, :] < length[:, None]).astype(jnp.float32)
        pooled = (jnp.sum(emb * mask[:, :, None], axis=1)
                  / jnp.sum(mask, axis=1, keepdims=True))
        return jnp.tanh(pooled @ params["wr"] + params["br"])

    def pred(z):
        h = z @ params["w1"] + params["b1"]
        inv = 1.0 / jnp.sqrt(params["bn_var"] + BN_EPS)
        h = (h - params["bn_mean"]) * inv * params["bn_gamma"] + params["bn_beta"]
        h = jnp.maximum(h, 0.0)
        return h @ params["w2"] + params["b2"]

    z1, z2 = rep(seq_1, length_1), rep(seq_2, length_2)
    return {"p1": pred(z1), "p2": pred(z2), "z1": z1, "z2": z2}


if __name__ == "__main__":
    key = jax.random.PRNGKey(0)
    kp, k1, k2, k3, k4 = jax.random.split(key, 5)

    params = init_params(kp)

    seq_1 = jax.random.randint(k1, (B, T), 0, VOCAB, dtype=jnp.int32)
    seq_2 = jax.random.randint(k2, (B, T), 0, VOCAB, dtype=jnp.int32)
    length_1 = jax.random.randint(k3, (B,), 1, T + 1, dtype=jnp.int32)
    length_2 = jax.random.randint(k4, (B,), 1, T + 1, dtype=jnp.int32)

    sample = smiles_siam_forward_jit(seq_1, length_1, seq_2, length_2, params)
    jax.block_until_ready(sample)

    assert sample["p1"].shape == (B, HID)
    assert sample["p2"].shape == (B, HID)
    assert sample["z1"].shape == (B, HID)
    assert sample["z2"].shape == (B, HID)

    ref = reference_forward(seq_1, length_1, seq_2, length_2, params)
    for k in ("z1", "z2", "p1", "p2"):
        assert bool(jnp.all(jnp.isfinite(sample[k])))
        assert bool(jnp.allclose(sample[k], ref[k], rtol=1e-2, atol=1e-2)), k

    print("KERNEL_OK")
</pallas_src>

<mosaic_0001>
module attributes {stable_mosaic.version = 11 : i64} {
  func.func @fused_siam_kernel(%arg0: memref<16x16xi32, #tpu.memory_space<vmem>>, %arg1: memref<16x1xi32, #tpu.memory_space<vmem>>, %arg2: memref<32x32xf32, #tpu.memory_space<vmem>>, %arg3: memref<32x32xf32, #tpu.memory_space<vmem>>, %arg4: memref<1x32xf32, #tpu.memory_space<vmem>>, %arg5: memref<32x64xf32, #tpu.memory_space<vmem>>, %arg6: memref<1x64xf32, #tpu.memory_space<vmem>>, %arg7: memref<64x32xf32, #tpu.memory_space<vmem>>, %arg8: memref<1x32xf32, #tpu.memory_space<vmem>>, %arg9: memref<8x128xf32, #tpu.memory_space<vmem>>) attributes {dimension_semantics = [], scalar_prefetch = 0 : i64, scratch_operands = 0 : i64, tpu.core_type = #tpu.core_type<tc>} {
    %c0 = arith.constant 0 : index
    %c0_0 = arith.constant 0 : index
    %0 = vector.load %arg0[%c0, %c0_0] : memref<16x16xi32, #tpu.memory_space<vmem>>, vector<16x16xi32>
    %c0_1 = arith.constant 0 : index
    %c0_2 = arith.constant 0 : index
    %1 = vector.load %arg1[%c0_1, %c0_2] : memref<16x1xi32, #tpu.memory_space<vmem>>, vector<16x1xi32>
    %2 = tpu.iota {dimensions = array<i32: 1>} : vector<16x16xi32>
    %3 = vector.broadcast %1 : vector<16x1xi32> to vector<16x16xi32>
    %4 = arith.cmpi slt, %2, %3 : vector<16x16xi32>
    %c-1_i32 = arith.constant -1 : i32
    %5 = vector.broadcast %c-1_i32 : i32 to vector<16x16xi32>
    %6 = arith.select %4, %0, %5 : vector<16x16xi1>, vector<16x16xi32>
    %7 = tpu.iota {dimensions = array<i32: 2>} : vector<16x16x32xi32>
    %8 = vector.shape_cast %6 : vector<16x16xi32> to vector<16x16x1xi32>
    %9 = vector.broadcast %8 : vector<16x16x1xi32> to vector<16x16x32xi32>
    %10 = arith.cmpi eq, %7, %9 : vector<16x16x32xi32>
    %11 = arith.extui %10 : vector<16x16x32xi1> to vector<16x16x32xi32>
    %12 = arith.sitofp %11 : vector<16x16x32xi32> to vector<16x16x32xf32>
    %cst = arith.constant dense<0.000000e+00> : vector<16x32xf32>
    %13 = vector.multi_reduction <add>, %12, %cst [1] : vector<16x16x32xf32> to vector<16x32xf32>
    %c0_3 = arith.constant 0 : index
    %c0_4 = arith.constant 0 : index
    %14 = vector.load %arg2[%c0_3, %c0_4] : memref<32x32xf32, #tpu.memory_space<vmem>>, vector<32x32xf32>
    %cst_5 = arith.constant dense<0.000000e+00> : vector<16x32xf32>
    %15 = tpu.matmul %13, %14, %cst_5 {dimension_numbers = #tpu.dot_dimension_numbers<[1], [0], [0], [1], [0, 0, 1, 1], [], []>} : vector<16x32xf32>, vector<32x32xf32>, vector<16x32xf32> -> vector<16x32xf32>
    %16 = arith.sitofp %1 : vector<16x1xi32> to vector<16x1xf32>
    %17 = tpu.reciprocal %16 {approx = true} : vector<16x1xf32> -> vector<16x1xf32>
    %18 = vector.broadcast %17 : vector<16x1xf32> to vector<16x32xf32>
    %19 = arith.mulf %15, %18 : vector<16x32xf32>
    %c0_6 = arith.constant 0 : index
    %c0_7 = arith.constant 0 : index
    %20 = vector.load %arg3[%c0_6, %c0_7] : memref<32x32xf32, #tpu.memory_space<vmem>>, vector<32x32xf32>
    %cst_8 = arith.constant dense<0.000000e+00> : vector<16x32xf32>
    %21 = tpu.matmul %19, %20, %cst_8 {dimension_numbers = #tpu.dot_dimension_numbers<[1], [0], [0], [1], [0, 0, 1, 1], [], []>} : vector<16x32xf32>, vector<32x32xf32>, vector<16x32xf32> -> vector<16x32xf32>
    %c0_9 = arith.constant 0 : index
    %c0_10 = arith.constant 0 : index
    %22 = vector.load %arg4[%c0_9, %c0_10] : memref<1x32xf32, #tpu.memory_space<vmem>>, vector<1x32xf32>
    %23 = vector.broadcast %22 : vector<1x32xf32> to vector<16x32xf32>
    %24 = arith.addf %21, %23 : vector<16x32xf32>
    %25 = math.tanh %24 : vector<16x32xf32>
    %c0_11 = arith.constant 0 : index
    %c0_12 = arith.constant 0 : index
    %26 = vector.load %arg5[%c0_11, %c0_12] : memref<32x64xf32, #tpu.memory_space<vmem>>, vector<32x64xf32>
    %cst_13 = arith.constant dense<0.000000e+00> : vector<16x64xf32>
    %27 = tpu.matmul %25, %26, %cst_13 {dimension_numbers = #tpu.dot_dimension_numbers<[1], [0], [0], [1], [0, 0, 1, 1], [], []>} : vector<16x32xf32>, vector<32x64xf32>, vector<16x64xf32> -> vector<16x64xf32>
    %c0_14 = arith.constant 0 : index
    %c0_15 = arith.constant 0 : index
    %28 = vector.load %arg6[%c0_14, %c0_15] : memref<1x64xf32, #tpu.memory_space<vmem>>, vector<1x64xf32>
    %29 = vector.broadcast %28 : vector<1x64xf32> to vector<16x64xf32>
    %30 = arith.addf %27, %29 : vector<16x64xf32>
    %cst_16 = arith.constant 0.000000e+00 : f32
    %31 = vector.broadcast %cst_16 : f32 to vector<16x64xf32>
    %32 = arith.maximumf %30, %31 : vector<16x64xf32>
    %c0_17 = arith.constant 0 : index
    %c0_18 = arith.constant 0 : index
    %33 = vector.load %arg7[%c0_17, %c0_18] : memref<64x32xf32, #tpu.memory_space<vmem>>, vector<64x32xf32>
    %cst_19 = arith.constant dense<0.000000e+00> : vector<16x32xf32>
    %34 = tpu.matmul %32, %33, %cst_19 {dimension_numbers = #tpu.dot_dimension_numbers<[1], [0], [0], [1], [0, 0, 1, 1], [], []>} : vector<16x64xf32>, vector<64x32xf32>, vector<16x32xf32> -> vector<16x32xf32>
    %c0_20 = arith.constant 0 : index
    %c0_21 = arith.constant 0 : index
    %35 = vector.load %arg8[%c0_20, %c0_21] : memref<1x32xf32, #tpu.memory_space<vmem>>, vector<1x32xf32>
    %36 = vector.broadcast %35 : vector<1x32xf32> to vector<16x32xf32>
    %37 = arith.addf %34, %36 : vector<16x32xf32>
    %38 = vector.extract_strided_slice %25 {offsets = [0, 0], sizes = [8, 32], strides = [1, 1]} : vector<16x32xf32> to vector<8x32xf32>
    %39 = vector.extract_strided_slice %25 {offsets = [8, 0], sizes = [8, 32], strides = [1, 1]} : vector<16x32xf32> to vector<8x32xf32>
    %40 = vector.extract_strided_slice %37 {offsets = [0, 0], sizes = [8, 32], strides = [1, 1]} : vector<16x32xf32> to vector<8x32xf32>
    %41 = vector.extract_strided_slice %37 {offsets = [8, 0], sizes = [8, 32], strides = [1, 1]} : vector<16x32xf32> to vector<8x32xf32>
    %42 = tpu.concatenate %38, %39, %40, %41 in 1 : vector<8x32xf32>, vector<8x32xf32>, vector<8x32xf32>, vector<8x32xf32> -> vector<8x128xf32>
    %c0_22 = arith.constant 0 : index
    %c0_23 = arith.constant 0 : index
    %43 = vector.load %arg9[%c0_22, %c0_23] : memref<8x128xf32, #tpu.memory_space<vmem>>, vector<8x128xf32>
    tpu.vector_store %arg9[%c0_22, %c0_23], %42 {strides = array<i32>} : memref<8x128xf32, #tpu.memory_space<vmem>>, vector<8x128xf32>,
    return
  }
}

</mosaic_0001>

<llo_original>
// kernel: smiles_siam_forward.1
$region0: #{smiles_siam_forward.1}
  #allocation0 [shape = 'u32[]', space=smem, size = 0x4, offset = 0x4, fixed_abs, tag = 'smem constant byte address 0x4 - core index']
  #allocation1 [shape = 'u32[144,128]{1,0:T(1,128)}', space=vmem, size = 0x12000, scoped, tag = 'internal scratch']
  %s0 = inlined_call_operand.vmem [shape: s32[16,16], index: 0, kind: input, shape index: {}]
  %s1 = inlined_call_operand.vmem [shape: s32[16,1], index: 1, kind: input, shape index: {}]
  %s2 = inlined_call_operand.vmem [shape: f32[32,32], index: 2, kind: input, shape index: {}]
  %s3 = inlined_call_operand.vmem [shape: f32[32,32], index: 3, kind: input, shape index: {}]
  %s4 = inlined_call_operand.vmem [shape: f32[1,32], index: 4, kind: input, shape index: {}]
  %s5 = inlined_call_operand.vmem [shape: f32[32,64], index: 5, kind: input, shape index: {}]
  %s6 = inlined_call_operand.vmem [shape: f32[1,64], index: 6, kind: input, shape index: {}]
  %s7 = inlined_call_operand.vmem [shape: f32[64,32], index: 7, kind: input, shape index: {}]
  %s8 = inlined_call_operand.vmem [shape: f32[1,32], index: 8, kind: input, shape index: {}]
  %s9 = inlined_call_operand.vmem [shape: f32[8,128], index: 9, kind: output, shape index: {}]
  %s10 = sld [smem:[#allocation0]]
  $region46: #{smiles_siam_forward.1} parent=0
    _
  %s12 = ssub.s32 1, %s10
  %s13 = scalar_select 0, %s12, %s10
  // Predicated region
  $region2: #{smiles_siam_forward.1} parent=0 // pred_check
    _
  $region3: #{smiles_siam_forward.1} parent=0 // pred_check_branch
    %15 = sbr.rel (0) target = $region5
  $region4: #{smiles_siam_forward.1} parent=0 // pred_region
    _
  $region5: #{smiles_siam_forward.1} parent=0 // pred_fallthru
    _
  // Predicated region
  $region6: #{smiles_siam_forward.1} parent=0 // pred_check
    _
  $region7: #{smiles_siam_forward.1} parent=0 // pred_check_branch
    %17 = sbr.rel (0) target = $region9
  $region8: #{smiles_siam_forward.1} parent=0 // pred_region
    _
  $region9: #{smiles_siam_forward.1} parent=0 // pred_fallthru
    _
  // Predicated region
  $region10: #{smiles_siam_forward.1} parent=0 // pred_check
    _
  $region11: #{smiles_siam_forward.1} parent=0 // pred_check_branch
    %19 = sbr.rel (0) target = $region13
  $region12: #{smiles_siam_forward.1} parent=0 // pred_region
    _
  $region13: #{smiles_siam_forward.1} parent=0 // pred_fallthru
    _
  // Predicated region
  $region14: #{smiles_siam_forward.1} parent=0 // pred_check
    _
  $region15: #{smiles_siam_forward.1} parent=0 // pred_check_branch
    %21 = sbr.rel (0) target = $region17
  $region16: #{smiles_siam_forward.1} parent=0 // pred_region
    _
  $region17: #{smiles_siam_forward.1} parent=0 // pred_fallthru
    _
  // Predicated region
  $region18: #{smiles_siam_forward.1} parent=0 // pred_check
    _
  $region19: #{smiles_siam_forward.1} parent=0 // pred_check_branch
    %23 = sbr.rel (0) target = $region21
  $region20: #{smiles_siam_forward.1} parent=0 // pred_region
    _
  $region21: #{smiles_siam_forward.1} parent=0 // pred_fallthru
    _
  // Predicated region
  $region22: #{smiles_siam_forward.1} parent=0 // pred_check
    _
  $region23: #{smiles_siam_forward.1} parent=0 // pred_check_branch
    %25 = sbr.rel (0) target = $region25
  $region24: #{smiles_siam_forward.1} parent=0 // pred_region
    _
  $region25: #{smiles_siam_forward.1} parent=0 // pred_fallthru
    _
  // Predicated region
  $region26: #{smiles_siam_forward.1} parent=0 // pred_check
    _
  $region27: #{smiles_siam_forward.1} parent=0 // pred_check_branch
    %27 = sbr.rel (0) target = $region29
  $region28: #{smiles_siam_forward.1} parent=0 // pred_region
    _
  $region29: #{smiles_siam_forward.1} parent=0 // pred_fallthru
    _
  // Predicated region
  $region30: #{smiles_siam_forward.1} parent=0 // pred_check
    _
  $region31: #{smiles_siam_forward.1} parent=0 // pred_check_branch
    %29 = sbr.rel (0) target = $region33
  $region32: #{smiles_siam_forward.1} parent=0 // pred_region
    _
  $region33: #{smiles_siam_forward.1} parent=0 // pred_fallthru
    _
  // Predicated region
  $region34: #{smiles_siam_forward.1} parent=0 // pred_check
    _
  $region35: #{smiles_siam_forward.1} parent=0 // pred_check_branch
    %31 = sbr.rel (0) target = $region37
  $region36: #{smiles_siam_forward.1} parent=0 // pred_region
    _
  $region37: #{smiles_siam_forward.1} parent=0 // pred_fallthru
    _
  %v32 = vld [vmem:[%s0] sm:$0xff]
  %v33 = vld [vmem:[%s0 + $0x8] sm:$0xff]
  %v34 = vld [vmem:[%s1] sm:$0xff]
  %v35 = vld [vmem:[%s1 + $0x8] sm:$0xff]
  %v36 = vlaneseq
  %v37 = vand.u32 %v36, 127
  %38 = vset.pattern.permute.xlu0 0
  %39 = vperm.xlu0 %38, %v34
  %v40 = vpop.permute.xlu0 %39
  %41 = vset.pattern.permute.xlu0 0
  %42 = vperm.xlu0 %41, %v35
  %v43 = vpop.permute.xlu0 %42
  %vm44 = vcmp.lt.s32.totalorder %v37, %v40
  %vm45 = vcmp.lt.s32.totalorder %v37, %v43
  %v46 = vsel %vm44, %v32, 4294967295
  %v47 = vsel %vm45, %v33, 4294967295
  %v48 = vlaneseq
  %v49 = vshrl.u32 %v48, 7
  %v50 = vsub.s32 0, %v49
  %v51 = vrot.slane %v46, %v50
  %53 = vbcast.lane.b32.xlu0 %v51, 256
  %v54 = vpop.permute.xlu0 %53
  %s56 = sor.u32 256, 8
  %57 = vbcast.lane.b32.xlu0 %v51, %s56
  %v58 = vpop.permute.xlu0 %57
  %v59 = vlaneseq
  %v60 = vshrl.u32 %v59, 7
  %v61 = vsub.s32 1, %v60
  %v62 = vrot.slane %v46, %v61
  %64 = vbcast.lane.b32.xlu0 %v62, 256
  %v65 = vpop.permute.xlu0 %64
  %s67 = sor.u32 256, 8
  %68 = vbcast.lane.b32.xlu0 %v62, %s67
  %v69 = vpop.permute.xlu0 %68
  %v70 = vlaneseq
  %v71 = vshrl.u32 %v70, 7
  %v72 = vsub.s32 2, %v71
  %v73 = vrot.slane %v46, %v72
  %75 = vbcast.lane.b32.xlu0 %v73, 256
  %v76 = vpop.permute.xlu0 %75
  %s78 = sor.u32 256, 8
  %79 = vbcast.lane.b32.xlu0 %v73, %s78
  %v80 = vpop.permute.xlu0 %79
  %v81 = vlaneseq
  %v82 = vshrl.u32 %v81, 7
  %v83 = vsub.s32 3, %v82
  %v84 = vrot.slane %v46, %v83
  %86 = vbcast.lane.b32.xlu0 %v84, 256
  %v87 = vpop.permute.xlu0 %86
  %s89 = sor.u32 256, 8
  %90 = vbcast.lane.b32.xlu0 %v84, %s89
  %v91 = vpop.permute.xlu0 %90
  %v92 = vlaneseq
  %v93 = vshrl.u32 %v92, 7
  %v94 = vsub.s32 4, %v93
  %v95 = vrot.slane %v46, %v94
  %97 = vbcast.lane.b32.xlu0 %v95, 256
  %v98 = vpop.permute.xlu0 %97
  %s100 = sor.u32 256, 8
  %101 = vbcast.lane.b32.xlu0 %v95, %s100
  %v102 = vpop.permute.xlu0 %101
  %v103 = vlaneseq
  %v104 = vshrl.u32 %v103, 7
  %v105 = vsub.s32 5, %v104
  %v106 = vrot.slane %v46, %v105
  %108 = vbcast.lane.b32.xlu0 %v106, 256
  %v109 = vpop.permute.xlu0 %108
  %s111 = sor.u32 256, 8
  %112 = vbcast.lane.b32.xlu0 %v106, %s111
  %v113 = vpop.permute.xlu0 %112
  %v114 = vlaneseq
  %v115 = vshrl.u32 %v114, 7
  %v116 = vsub.s32 6, %v115
  %v117 = vrot.slane %v46, %v116
  %119 = vbcast.lane.b32.xlu0 %v117, 256
  %v120 = vpop.permute.xlu0 %119
  %s122 = sor.u32 256, 8
  %123 = vbcast.lane.b32.xlu0 %v117, %s122
  %v124 = vpop.permute.xlu0 %123
  %v125 = vlaneseq
  %v126 = vshrl.u32 %v125, 7
  %v127 = vsub.s32 7, %v126
  %v128 = vrot.slane %v46, %v127
  %130 = vbcast.lane.b32.xlu0 %v128, 256
  %v131 = vpop.permute.xlu0 %130
  %s133 = sor.u32 256, 8
  %134 = vbcast.lane.b32.xlu0 %v128, %s133
  %v135 = vpop.permute.xlu0 %134
  %v136 = vlaneseq
  %v137 = vshrl.u32 %v136, 7
  %v138 = vsub.s32 0, %v137
  %v139 = vrot.slane %v47, %v138
  %141 = vbcast.lane.b32.xlu0 %v139, 256
  %v142 = vpop.permute.xlu0 %141
  %s144 = sor.u32 256, 8
  %145 = vbcast.lane.b32.xlu0 %v139, %s144
  %v146 = vpop.permute.xlu0 %145
  %v147 = vlaneseq
  %v148 = vshrl.u32 %v147, 7
  %v149 = vsub.s32 1, %v148
  %v150 = vrot.slane %v47, %v149
  %152 = vbcast.lane.b32.xlu0 %v150, 256
  %v153 = vpop.permute.xlu0 %152
  %s155 = sor.u32 256, 8
  %156 = vbcast.lane.b32.xlu0 %v150, %s155
  %v157 = vpop.permute.xlu0 %156
  %v158 = vlaneseq
  %v159 = vshrl.u32 %v158, 7
  %v160 = vsub.s32 2, %v159
  %v161 = vrot.slane %v47, %v160
  %163 = vbcast.lane.b32.xlu0 %v161, 256
  %v164 = vpop.permute.xlu0 %163
  %s166 = sor.u32 256, 8
  %167 = vbcast.lane.b32.xlu0 %v161, %s166
  %v168 = vpop.permute.xlu0 %167
  %v169 = vlaneseq
  %v170 = vshrl.u32 %v169, 7
  %v171 = vsub.s32 3, %v170
  %v172 = vrot.slane %v47, %v171
  %174 = vbcast.lane.b32.xlu0 %v172, 256
  %v175 = vpop.permute.xlu0 %174
  %s177 = sor.u32 256, 8
  %178 = vbcast.lane.b32.xlu0 %v172, %s177
  %v179 = vpop.permute.xlu0 %178
  %v180 = vlaneseq
  %v181 = vshrl.u32 %v180, 7
  %v182 = vsub.s32 4, %v181
  %v183 = vrot.slane %v47, %v182
  %185 = vbcast.lane.b32.xlu0 %v183, 256
  %v186 = vpop.permute.xlu0 %185
  %s188 = sor.u32 256, 8
  %189 = vbcast.lane.b32.xlu0 %v183, %s188
  %v190 = vpop.permute.xlu0 %189
  %v191 = vlaneseq
  %v192 = vshrl.u32 %v191, 7
  %v193 = vsub.s32 5, %v192
  %v194 = vrot.slane %v47, %v193
  %196 = vbcast.lane.b32.xlu0 %v194, 256
  %v197 = vpop.permute.xlu0 %196
  %s199 = sor.u32 256, 8
  %200 = vbcast.lane.b32.xlu0 %v194, %s199
  %v201 = vpop.permute.xlu0 %200
  %v202 = vlaneseq
  %v203 = vshrl.u32 %v202, 7
  %v204 = vsub.s32 6, %v203
  %v205 = vrot.slane %v47, %v204
  %207 = vbcast.lane.b32.xlu0 %v205, 256
  %v208 = vpop.permute.xlu0 %207
  %s210 = sor.u32 256, 8
  %211 = vbcast.lane.b32.xlu0 %v205, %s210
  %v212 = vpop.permute.xlu0 %211
  %v213 = vlaneseq
  %v214 = vshrl.u32 %v213, 7
  %v215 = vsub.s32 7, %v214
  %v216 = vrot.slane %v47, %v215
  %218 = vbcast.lane.b32.xlu0 %v216, 256
  %v219 = vpop.permute.xlu0 %218
  %s221 = sor.u32 256, 8
  %222 = vbcast.lane.b32.xlu0 %v216, %s221
  %v223 = vpop.permute.xlu0 %222
  %vm224 = vcmp.eq.s32.totalorder %v37, %v54
  %vm225 = vcmp.eq.s32.totalorder %v37, %v58
  %vm226 = vcmp.eq.s32.totalorder %v37, %v65
  %vm227 = vcmp.eq.s32.totalorder %v37, %v69
  %vm228 = vcmp.eq.s32.totalorder %v37, %v76
  %vm229 = vcmp.eq.s32.totalorder %v37, %v80
  %vm230 = vcmp.eq.s32.totalorder %v37, %v87
  %vm231 = vcmp.eq.s32.totalorder %v37, %v91
  %vm232 = vcmp.eq.s32.totalorder %v37, %v98
  %vm233 = vcmp.eq.s32.totalorder %v37, %v102
  %vm234 = vcmp.eq.s32.totalorder %v37, %v109
  %vm235 = vcmp.eq.s32.totalorder %v37, %v113
  %vm236 = vcmp.eq.s32.totalorder %v37, %v120
  %vm237 = vcmp.eq.s32.totalorder %v37, %v124
  %vm238 = vcmp.eq.s32.totalorder %v37, %v131
  %vm239 = vcmp.eq.s32.totalorder %v37, %v135
  %vm240 = vcmp.eq.s32.totalorder %v37, %v142
  %vm241 = vcmp.eq.s32.totalorder %v37, %v146
  %vm242 = vcmp.eq.s32.totalorder %v37, %v153
  %vm243 = vcmp.eq.s32.totalorder %v37, %v157
  %vm244 = vcmp.eq.s32.totalorder %v37, %v164
  %vm245 = vcmp.eq.s32.totalorder %v37, %v168
  %vm246 = vcmp.eq.s32.totalorder %v37, %v175
  %vm247 = vcmp.eq.s32.totalorder %v37, %v179
  %vm248 = vcmp.eq.s32.totalorder %v37, %v186
  %vm249 = vcmp.eq.s32.totalorder %v37, %v190
  %vm250 = vcmp.eq.s32.totalorder %v37, %v197
  %vm251 = vcmp.eq.s32.totalorder %v37, %v201
  %vm252 = vcmp.eq.s32.totalorder %v37, %v208
  %vm253 = vcmp.eq.s32.totalorder %v37, %v212
  %vm254 = vcmp.eq.s32.totalorder %v37, %v219
  %vm255 = vcmp.eq.s32.totalorder %v37, %v223
  %v256 = vsel %vm224, 1, 0
  %v257 = vsel %vm225, 1, 0
  %v258 = vsel %vm226, 1, 0
  %v259 = vsel %vm227, 1, 0
  %v260 = vsel %vm228, 1, 0
  %v261 = vsel %vm229, 1, 0
  %v262 = vsel %vm230, 1, 0
  %v263 = vsel %vm231, 1, 0
  %v264 = vsel %vm232, 1, 0
  %v265 = vsel %vm233, 1, 0
  %v266 = vsel %vm234, 1, 0
  %v267 = vsel %vm235, 1, 0
  %v268 = vsel %vm236, 1, 0
  %v269 = vsel %vm237, 1, 0
  %v270 = vsel %vm238, 1, 0
  %v271 = vsel %vm239, 1, 0
  %v272 = vsel %vm240, 1, 0
  %v273 = vsel %vm241, 1, 0
  %v274 = vsel %vm242, 1, 0
  %v275 = vsel %vm243, 1, 0
  %v276 = vsel %vm244, 1, 0
  %v277 = vsel %vm245, 1, 0
  %v278 = vsel %vm246, 1, 0
  %v279 = vsel %vm247, 1, 0
  %v280 = vsel %vm248, 1, 0
  %v281 = vsel %vm249, 1, 0
  %v282 = vsel %vm250, 1, 0
  %v283 = vsel %vm251, 1, 0
  %v284 = vsel %vm252, 1, 0
  %v285 = vsel %vm253, 1, 0
  %v286 = vsel %vm254, 1, 0
  %v287 = vsel %vm255, 1, 0
  %v288 = vcvt.s32.f32 %v256
  %v289 = vcvt.s32.f32 %v257
  %v290 = vcvt.s32.f32 %v258
  %v291 = vcvt.s32.f32 %v259
  %v292 = vcvt.s32.f32 %v260
  %v293 = vcvt.s32.f32 %v261
  %v294 = vcvt.s32.f32 %v262
  %v295 = vcvt.s32.f32 %v263
  %v296 = vcvt.s32.f32 %v264
  %v297 = vcvt.s32.f32 %v265
  %v298 = vcvt.s32.f32 %v266
  %v299 = vcvt.s32.f32 %v267
  %v300 = vcvt.s32.f32 %v268
  %v301 = vcvt.s32.f32 %v269
  %v302 = vcvt.s32.f32 %v270
  %v303 = vcvt.s32.f32 %v271
  %v304 = vcvt.s32.f32 %v272
  %v305 = vcvt.s32.f32 %v273
  %v306 = vcvt.s32.f32 %v274
  %v307 = vcvt.s32.f32 %v275
  %v308 = vcvt.s32.f32 %v276
  %v309 = vcvt.s32.f32 %v277
  %v310 = vcvt.s32.f32 %v278
  %v311 = vcvt.s32.f32 %v279
  %v312 = vcvt.s32.f32 %v280
  %v313 = vcvt.s32.f32 %v281
  %v314 = vcvt.s32.f32 %v282
  %v315 = vcvt.s32.f32 %v283
  %v316 = vcvt.s32.f32 %v284
  %v317 = vcvt.s32.f32 %v285
  %v318 = vcvt.s32.f32 %v286
  %v319 = vcvt.s32.f32 %v287
  %vm320 = vcmask 261120
  %v321 = vsel %vm320, %v288, 0.0
  %v322 = vsel %vm320, %v289, 0.0
  %v323 = vadd.f32 %v321, %v322
  %v324 = vrot.slane %v323, 4
  %v325 = vadd.f32 %v323, %v324
  %v326 = vrot.slane %v325, 2
  %v327 = vadd.f32 %v325, %v326
  %v328 = vrot.slane %v327, 1
  %v329 = vadd.f32 %v327, %v328
  %v330 = vsel %vm320, %v290, 0.0
  %v331 = vsel %vm320, %v291, 0.0
  %v332 = vadd.f32 %v330, %v331
  %v333 = vrot.slane %v332, 4
  %v334 = vadd.f32 %v332, %v333
  %v335 = vrot.slane %v334, 2
  %v336 = vadd.f32 %v334, %v335
  %v337 = vrot.slane %v336, 1
  %v338 = vadd.f32 %v336, %v337
  %v339 = vsel %vm320, %v292, 0.0
  %v340 = vsel %vm320, %v293, 0.0
  %v341 = vadd.f32 %v339, %v340
  %v342 = vrot.slane %v341, 4
  %v343 = vadd.f32 %v341, %v342
  %v344 = vrot.slane %v343, 2
  %v345 = vadd.f32 %v343, %v344
  %v346 = vrot.slane %v345, 1
  %v347 = vadd.f32 %v345, %v346
  %v348 = vsel %vm320, %v294, 0.0
  %v349 = vsel %vm320, %v295, 0.0
  %v350 = vadd.f32 %v348, %v349
  %v351 = vrot.slane %v350, 4
  %v352 = vadd.f32 %v350, %v351
  %v353 = vrot.slane %v352, 2
  %v354 = vadd.f32 %v352, %v353
  %v355 = vrot.slane %v354, 1
  %v356 = vadd.f32 %v354, %v355
  %v357 = vsel %vm320, %v296, 0.0
  %v358 = vsel %vm320, %v297, 0.0
  %v359 = vadd.f32 %v357, %v358
  %v360 = vrot.slane %v359, 4
  %v361 = vadd.f32 %v359, %v360
  %v362 = vrot.slane %v361, 2
  %v363 = vadd.f32 %v361, %v362
  %v364 = vrot.slane %v363, 1
  %v365 = vadd.f32 %v363, %v364
  %v366 = vsel %vm320, %v298, 0.0
  %v367 = vsel %vm320, %v299, 0.0
  %v368 = vadd.f32 %v366, %v367
  %v369 = vrot.slane %v368, 4
  %v370 = vadd.f32 %v368, %v369
  %v371 = vrot.slane %v370, 2
  %v372 = vadd.f32 %v370, %v371
  %v373 = vrot.slane %v372, 1
  %v374 = vadd.f32 %v372, %v373
  %v375 = vsel %vm320, %v300, 0.0
  %v376 = vsel %vm320, %v301, 0.0
  %v377 = vadd.f32 %v375, %v376
  %v378 = vrot.slane %v377, 4
  %v379 = vadd.f32 %v377, %v378
  %v380 = vrot.slane %v379, 2
  %v381 = vadd.f32 %v379, %v380
  %v382 = vrot.slane %v381, 1
  %v383 = vadd.f32 %v381, %v382
  %v384 = vsel %vm320, %v302, 0.0
  %v385 = vsel %vm320, %v303, 0.0
  %v386 = vadd.f32 %v384, %v385
  %v387 = vrot.slane %v386, 4
  %v388 = vadd.f32 %v386, %v387
  %v389 = vrot.slane %v388, 2
  %v390 = vadd.f32 %v388, %v389
  %v391 = vrot.slane %v390, 1
  %v392 = vadd.f32 %v390, %v391
  %v393 = vsel %vm320, %v304, 0.0
  %v394 = vsel %vm320, %v305, 0.0
  %v395 = vadd.f32 %v393, %v394
  %v396 = vrot.slane %v395, 4
  %v397 = vadd.f32 %v395, %v396
  %v398 = vrot.slane %v397, 2
  %v399 = vadd.f32 %v397, %v398
  %v400 = vrot.slane %v399, 1
  %v401 = vadd.f32 %v399, %v400
  %v402 = vsel %vm320, %v306, 0.0
  %v403 = vsel %vm320, %v307, 0.0
  %v404 = vadd.f32 %v402, %v403
  %v405 = vrot.slane %v404, 4
  %v406 = vadd.f32 %v404, %v405
  %v407 = vrot.slane %v406, 2
  %v408 = vadd.f32 %v406, %v407
  %v409 = vrot.slane %v408, 1
  %v410 = vadd.f32 %v408, %v409
  %v411 = vsel %vm320, %v308, 0.0
  %v412 = vsel %vm320, %v309, 0.0
  %v413 = vadd.f32 %v411, %v412
  %v414 = vrot.slane %v413, 4
  %v415 = vadd.f32 %v413, %v414
  %v416 = vrot.slane %v415, 2
  %v417 = vadd.f32 %v415, %v416
  %v418 = vrot.slane %v417, 1
  %v419 = vadd.f32 %v417, %v418
  %v420 = vsel %vm320, %v310, 0.0
  %v421 = vsel %vm320, %v311, 0.0
  %v422 = vadd.f32 %v420, %v421
  %v423 = vrot.slane %v422, 4
  %v424 = vadd.f32 %v422, %v423
  %v425 = vrot.slane %v424, 2
  %v426 = vadd.f32 %v424, %v425
  %v427 = vrot.slane %v426, 1
  %v428 = vadd.f32 %v426, %v427
  %v429 = vsel %vm320, %v312, 0.0
  %v430 = vsel %vm320, %v313, 0.0
  %v431 = vadd.f32 %v429, %v430
  %v432 = vrot.slane %v431, 4
  %v433 = vadd.f32 %v431, %v432
  %v434 = vrot.slane %v433, 2
  %v435 = vadd.f32 %v433, %v434
  %v436 = vrot.slane %v435, 1
  %v437 = vadd.f32 %v435, %v436
  %v438 = vsel %vm320, %v314, 0.0
  %v439 = vsel %vm320, %v315, 0.0
  %v440 = vadd.f32 %v438, %v439
  %v441 = vrot.slane %v440, 4
  %v442 = vadd.f32 %v440, %v441
  %v443 = vrot.slane %v442, 2
  %v444 = vadd.f32 %v442, %v443
  %v445 = vrot.slane %v444, 1
  %v446 = vadd.f32 %v444, %v445
  %v447 = vsel %vm320, %v316, 0.0
  %v448 = vsel %vm320, %v317, 0.0
  %v449 = vadd.f32 %v447, %v448
  %v450 = vrot.slane %v449, 4
  %v451 = vadd.f32 %v449, %v450
  %v452 = vrot.slane %v451, 2
  %v453 = vadd.f32 %v451, %v452
  %v454 = vrot.slane %v453, 1
  %v455 = vadd.f32 %v453, %v454
  %v456 = vsel %vm320, %v318, 0.0
  %v457 = vsel %vm320, %v319, 0.0
  %v458 = vadd.f32 %v456, %v457
  %v459 = vrot.slane %v458, 4
  %v460 = vadd.f32 %v458, %v459
  %v461 = vrot.slane %v460, 2
  %v462 = vadd.f32 %v460, %v461
  %v463 = vrot.slane %v462, 1
  %v464 = vadd.f32 %v462, %v463
  %v465 = vld [vmem:[%s2] sm:$0xff]
  %v466 = vld [vmem:[%s2 + $0x8] sm:$0xff]
  %v467 = vld [vmem:[%s2 + $0x10] sm:$0xff]
  %v468 = vld [vmem:[%s2 + $0x18] sm:$0xff]
  %vm485 = vcmask 1041409
  %v486 = vsel %vm485, %v338, %v329
  %vm487 = vcmask 1042434
  %v488 = vsel %vm487, %v347, %v486
  %vm489 = vcmask 1043459
  %v490 = vsel %vm489, %v356, %v488
  %vm491 = vcmask 1044484
  %v492 = vsel %vm491, %v365, %v490
  %vm493 = vcmask 1045509
  %v494 = vsel %vm493, %v374, %v492
  %vm495 = vcmask 1046534
  %v496 = vsel %vm495, %v383, %v494
  %vm497 = vcmask 1047559
  %v498 = vsel %vm497, %v392, %v496
  %v499 = vsel %vm485, %v410, %v401
  %v500 = vsel %vm487, %v419, %v499
  %v501 = vsel %vm489, %v428, %v500
  %v502 = vsel %vm491, %v437, %v501
  %v503 = vsel %vm493, %v446, %v502
  %v504 = vsel %vm495, %v455, %v503
  %v505 = vsel %vm497, %v464, %v504
  %v506 = vsel %vm320, %v498, 0
  %v508 = vsel %vm320, %v505, 0
  %510 = vmatprep.subr.mxu0 0.0
  %511 = vmatpush1.msra.mxu0 0.0
  %512 = vmatprep.subr.mxu0 0.0
  %513 = vmatpush1.msra.mxu0 0.0
  %514 = vmatprep.subr.mxu0 0.0
  %515 = vmatpush1.msra.mxu0 0.0
  %516 = vmatprep.subr.mxu0 0.0
  %517 = vmatpush1.msra.mxu0 0.0
  %518 = vmatprep.subr.mxu0 0.0
  %519 = vmatpush1.msra.mxu0 0.0
  %520 = vmatprep.subr.mxu0 0.0
  %521 = vmatpush1.msra.mxu0 0.0
  %522 = vmatprep.subr.mxu0 0.0
  %523 = vmatpush1.msra.mxu0 0.0
  %524 = vmatprep.subr.mxu0 0.0
  %525 = vmatpush1.msra.mxu0 0.0
  %526 = vmatprep.subr.mxu0 0.0
  %527 = vmatpush1.msra.mxu0 0.0
  %528 = vmatprep.subr.mxu0 0.0
  %529 = vmatpush1.msra.mxu0 0.0
  %530 = vmatprep.subr.mxu0 0.0
  %531 = vmatpush1.msra.mxu0 0.0
  %532 = vmatprep.subr.mxu0 0.0
  %533 = vmatpush1.msra.mxu0 0.0
  %534 = vmatprep.subr.mxu0 0.0
  %535 = vmatpush1.msra.mxu0 %v468
  %536 = vmatprep.subr.mxu0 0.0
  %537 = vmatpush1.msra.mxu0 %v467
  %538 = vmatprep.subr.mxu0 0.0
  %539 = vmatpush1.msra.mxu0 %v466
  %540 = vmatprep.subr.mxu0 0.0
  %541 = vmatpush1.msra.mxu0 %v465
  %542 = vmatprep.subr.mxu0 0.0
  %543 = vmatpush2.msra.mxu0 0.0
  %544 = vmatprep.subr.mxu0 0.0
  %545 = vmatpush2.msra.mxu0 0.0
  %546 = vmatprep.subr.mxu0 0.0
  %547 = vmatpush2.msra.mxu0 0.0
  %548 = vmatprep.subr.mxu0 0.0
  %549 = vmatpush2.msra.mxu0 0.0
  %550 = vmatprep.subr.mxu0 0.0
  %551 = vmatpush2.msra.mxu0 0.0
  %552 = vmatprep.subr.mxu0 0.0
  %553 = vmatpush2.msra.mxu0 0.0
  %554 = vmatprep.subr.mxu0 0.0
  %555 = vmatpush2.msra.mxu0 0.0
  %556 = vmatprep.subr.mxu0 0.0
  %557 = vmatpush2.msra.mxu0 0.0
  %558 = vmatprep.subr.mxu0 0.0
  %559 = vmatpush2.msra.mxu0 0.0
  %560 = vmatprep.subr.mxu0 0.0
  %561 = vmatpush2.msra.mxu0 0.0
  %562 = vmatprep.subr.mxu0 0.0
  %563 = vmatpush2.msra.mxu0 0.0
  %564 = vmatprep.subr.mxu0 0.0
  %565 = vmatpush2.msra.mxu0 0.0
  %566 = vmatprep.subr.mxu0 0.0
  %567 = vmatpush2.msra.mxu0 0.0
  %568 = vmatprep.subr.mxu0 0.0
  %569 = vmatpush2.msra.mxu0 0.0
  %570 = vmatprep.subr.mxu0 0.0
  %571 = vmatpush2.msra.mxu0 0.0
  %572 = vmatprep.subr.mxu0 0.0
  %573 = vmatpush2.msra.mxu0 0.0
  %574 = vmatprep.mubr.f32.mxu0 0.0
  %575 = vmatmul.mubr.f32.gmra.mxu0 %v506
  %v576 = vpop.f32.mrf.mxu0
  %v577 = vadd.f32 0.0, %v576
  %v578 = vpop.f32.mrf.mxu0
  %579 = vmatprep.mubr.f32.mxu0 0.0
  %580 = vmatmul.mubr.f32.gmra.mxu0 %v508
  %v581 = vpop.f32.mrf.mxu0
  %v582 = vadd.f32 0.0, %v581
  %v583 = vpop.f32.mrf.mxu0
  %584 = vdwg.mxu0
  %v585 = vcvt.s32.f32 %v34
  %v586 = vcvt.s32.f32 %v35
  %v587 = vrcp.pop %v585
  %v588 = vrcp.pop %v586
  %590 = vset.pattern.permute.xlu0 0
  %591 = vperm.xlu0 %590, %v587
  %v592 = vpop.permute.xlu0 %591
  %595 = vset.pattern.permute.xlu0 0
  %596 = vperm.xlu0 %595, %v588
  %v597 = vpop.permute.xlu0 %596
  %v599 = vmul.f32 %v577, %v592
  %v600 = vmul.f32 %v582, %v597
  %v601 = vld [vmem:[%s3] sm:$0xff]
  %v602 = vld [vmem:[%s3 + $0x8] sm:$0xff]
  %v603 = vld [vmem:[%s3 + $0x10] sm:$0xff]
  %v604 = vld [vmem:[%s3 + $0x18] sm:$0xff]
  %v605 = vld [vmem:[%s4] sm:$0x1]
  %v607 = vlaneseq
  %v608 = vshrl.u32 %v607, 7
  %v609 = vsub.s32 0, %v608
  %v610 = vrot.slane %v605, %v609
  %v613 = vsel %vm320, %v599, 0
  %v616 = vsel %vm320, %v600, 0
  %618 = vmatprep.subr.mxu0 0.0
  %619 = vmatpush1.msra.mxu0 0.0
  %620 = vmatprep.subr.mxu0 0.0
  %621 = vmatpush1.msra.mxu0 0.0
  %622 = vmatprep.subr.mxu0 0.0
  %623 = vmatpush1.msra.mxu0 0.0
  %624 = vmatprep.subr.mxu0 0.0
  %625 = vmatpush1.msra.mxu0 0.0
  %626 = vmatprep.subr.mxu0 0.0
  %627 = vmatpush1.msra.mxu0 0.0
  %628 = vmatprep.subr.mxu0 0.0
  %629 = vmatpush1.msra.mxu0 0.0
  %630 = vmatprep.subr.mxu0 0.0
  %631 = vmatpush1.msra.mxu0 0.0
  %632 = vmatprep.subr.mxu0 0.0
  %633 = vmatpush1.msra.mxu0 0.0
  %634 = vmatprep.subr.mxu0 0.0
  %635 = vmatpush1.msra.mxu0 0.0
  %636 = vmatprep.subr.mxu0 0.0
  %637 = vmatpush1.msra.mxu0 0.0
  %638 = vmatprep.subr.mxu0 0.0
  %639 = vmatpush1.msra.mxu0 0.0
  %640 = vmatprep.subr.mxu0 0.0
  %641 = vmatpush1.msra.mxu0 0.0
  %642 = vmatprep.subr.mxu0 0.0
  %643 = vmatpush1.msra.mxu0 %v604
  %644 = vmatprep.subr.mxu0 0.0
  %645 = vmatpush1.msra.mxu0 %v603
  %646 = vmatprep.subr.mxu0 0.0
  %647 = vmatpush1.msra.mxu0 %v602
  %648 = vmatprep.subr.mxu0 0.0
  %649 = vmatpush1.msra.mxu0 %v601
  %650 = vmatprep.subr.mxu0 0.0
  %651 = vmatpush2.msra.mxu0 0.0
  %652 = vmatprep.subr.mxu0 0.0
  %653 = vmatpush2.msra.mxu0 0.0
  %654 = vmatprep.subr.mxu0 0.0
  %655 = vmatpush2.msra.mxu0 0.0
  %656 = vmatprep.subr.mxu0 0.0
  %657 = vmatpush2.msra.mxu0 0.0
  %658 = vmatprep.subr.mxu0 0.0
  %659 = vmatpush2.msra.mxu0 0.0
  %660 = vmatprep.subr.mxu0 0.0
  %661 = vmatpush2.msra.mxu0 0.0
  %662 = vmatprep.subr.mxu0 0.0
  %663 = vmatpush2.msra.mxu0 0.0
  %664 = vmatprep.subr.mxu0 0.0
  %665 = vmatpush2.msra.mxu0 0.0
  %666 = vmatprep.subr.mxu0 0.0
  %667 = vmatpush2.msra.mxu0 0.0
  %668 = vmatprep.subr.mxu0 0.0
  %669 = vmatpush2.msra.mxu0 0.0
  %670 = vmatprep.subr.mxu0 0.0
  %671 = vmatpush2.msra.mxu0 0.0
  %672 = vmatprep.subr.mxu0 0.0
  %673 = vmatpush2.msra.mxu0 0.0
  %674 = vmatprep.subr.mxu0 0.0
  %675 = vmatpush2.msra.mxu0 0.0
  %676 = vmatprep.subr.mxu0 0.0
  %677 = vmatpush2.msra.mxu0 0.0
  %678 = vmatprep.subr.mxu0 0.0
  %679 = vmatpush2.msra.mxu0 0.0
  %680 = vmatprep.subr.mxu0 0.0
  %681 = vmatpush2.msra.mxu0 0.0
  %682 = vmatprep.mubr.f32.mxu0 0.0
  %683 = vmatmul.mubr.f32.gmra.mxu0 %v613
  %v684 = vpop.f32.mrf.mxu0
  %v685 = vadd.f32 %v610, %v684
  %v686 = vpop.f32.mrf.mxu0
  %687 = vmatprep.mubr.f32.mxu0 0.0
  %688 = vmatmul.mubr.f32.gmra.mxu0 %v616
  %v689 = vpop.f32.mrf.mxu0
  %v690 = vadd.f32 %v610, %v689
  %v691 = vpop.f32.mrf.mxu0
  %692 = vdwg.mxu0
  %v693 = vtanh.pop %v685
  %v694 = vtanh.pop %v690
  %v695 = vld [vmem:[%s5] sm:$0xff]
  %v696 = vld [vmem:[%s5 + $0x8] sm:$0xff]
  %v697 = vld [vmem:[%s5 + $0x10] sm:$0xff]
  %v698 = vld [vmem:[%s5 + $0x18] sm:$0xff]
  %v699 = vld [vmem:[%s6] sm:$0x1]
  %v701 = vlaneseq
  %v702 = vshrl.u32 %v701, 7
  %v703 = vsub.s32 0, %v702
  %v704 = vrot.slane %v699, %v703
  %v707 = vsel %vm320, %v693, 0
  %v710 = vsel %vm320, %v694, 0
  %712 = vmatprep.subr.mxu0 0.0
  %713 = vmatpush1.msra.mxu0 0.0
  %714 = vmatprep.subr.mxu0 0.0
  %715 = vmatpush1.msra.mxu0 0.0
  %716 = vmatprep.subr.mxu0 0.0
  %717 = vmatpush1.msra.mxu0 0.0
  %718 = vmatprep.subr.mxu0 0.0
  %719 = vmatpush1.msra.mxu0 0.0
  %720 = vmatprep.subr.mxu0 0.0
  %721 = vmatpush1.msra.mxu0 0.0
  %722 = vmatprep.subr.mxu0 0.0
  %723 = vmatpush1.msra.mxu0 0.0
  %724 = vmatprep.subr.mxu0 0.0
  %725 = vmatpush1.msra.mxu0 0.0
  %726 = vmatprep.subr.mxu0 0.0
  %727 = vmatpush1.msra.mxu0 0.0
  %728 = vmatprep.subr.mxu0 0.0
  %729 = vmatpush1.msra.mxu0 0.0
  %730 = vmatprep.subr.mxu0 0.0
  %731 = vmatpush1.msra.mxu0 0.0
  %732 = vmatprep.subr.mxu0 0.0
  %733 = vmatpush1.msra.mxu0 0.0
  %734 = vmatprep.subr.mxu0 0.0
  %735 = vmatpush1.msra.mxu0 0.0
  %736 = vmatprep.subr.mxu0 0.0
  %737 = vmatpush1.msra.mxu0 %v698
  %738 = vmatprep.subr.mxu0 0.0
  %739 = vmatpush1.msra.mxu0 %v697
  %740 = vmatprep.subr.mxu0 0.0
  %741 = vmatpush1.msra.mxu0 %v696
  %742 = vmatprep.subr.mxu0 0.0
  %743 = vmatpush1.msra.mxu0 %v695
  %744 = vmatprep.subr.mxu0 0.0
  %745 = vmatpush2.msra.mxu0 0.0
  %746 = vmatprep.subr.mxu0 0.0
  %747 = vmatpush2.msra.mxu0 0.0
  %748 = vmatprep.subr.mxu0 0.0
  %749 = vmatpush2.msra.mxu0 0.0
  %750 = vmatprep.subr.mxu0 0.0
  %751 = vmatpush2.msra.mxu0 0.0
  %752 = vmatprep.subr.mxu0 0.0
  %753 = vmatpush2.msra.mxu0 0.0
  %754 = vmatprep.subr.mxu0 0.0
  %755 = vmatpush2.msra.mxu0 0.0
  %756 = vmatprep.subr.mxu0 0.0
  %757 = vmatpush2.msra.mxu0 0.0
  %758 = vmatprep.subr.mxu0 0.0
  %759 = vmatpush2.msra.mxu0 0.0
  %760 = vmatprep.subr.mxu0 0.0
  %761 = vmatpush2.msra.mxu0 0.0
  %762 = vmatprep.subr.mxu0 0.0
  %763 = vmatpush2.msra.mxu0 0.0
  %764 = vmatprep.subr.mxu0 0.0
  %765 = vmatpush2.msra.mxu0 0.0
  %766 = vmatprep.subr.mxu0 0.0
  %767 = vmatpush2.msra.mxu0 0.0
  %768 = vmatprep.subr.mxu0 0.0
  %769 = vmatpush2.msra.mxu0 0.0
  %770 = vmatprep.subr.mxu0 0.0
  %771 = vmatpush2.msra.mxu0 0.0
  %772 = vmatprep.subr.mxu0 0.0
  %773 = vmatpush2.msra.mxu0 0.0
  %774 = vmatprep.subr.mxu0 0.0
  %775 = vmatpush2.msra.mxu0 0.0
  %776 = vmatprep.mubr.f32.mxu0 0.0
  %777 = vmatmul.mubr.f32.gmra.mxu0 %v707
  %v778 = vpop.f32.mrf.mxu0
  %v779 = vadd.f32 %v704, %v778
  %v780 = vpop.f32.mrf.mxu0
  %781 = vmatprep.mubr.f32.mxu0 0.0
  %782 = vmatmul.mubr.f32.gmra.mxu0 %v710
  %v783 = vpop.f32.mrf.mxu0
  %v784 = vadd.f32 %v704, %v783
  %v785 = vpop.f32.mrf.mxu0
  %786 = vdwg.mxu0
  %v787 = vmax.f32 %v779, 0.0
  %v788 = vmax.f32 %v784, 0.0
  %v789 = vld [vmem:[%s7] sm:$0xff]
  %v790 = vld [vmem:[%s7 + $0x8] sm:$0xff]
  %v791 = vld [vmem:[%s7 + $0x10] sm:$0xff]
  %v792 = vld [vmem:[%s7 + $0x18] sm:$0xff]
  %v793 = vld [vmem:[%s7 + $0x20] sm:$0xff]
  %v794 = vld [vmem:[%s7 + $0x28] sm:$0xff]
  %v795 = vld [vmem:[%s7 + $0x30] sm:$0xff]
  %v796 = vld [vmem:[%s7 + $0x38] sm:$0xff]
  %v797 = vld [vmem:[%s8] sm:$0x1]
  %v799 = vlaneseq
  %v800 = vshrl.u32 %v799, 7
  %v801 = vsub.s32 0, %v800
  %v802 = vrot.slane %v797, %v801
  %vm804 = vcmask 523264
  %v806 = vsel %vm804, %v787, 0
  %v809 = vsel %vm804, %v788, 0
  %811 = vmatprep.subr.mxu0 0.0
  %812 = vmatpush1.msra.mxu0 0.0
  %813 = vmatprep.subr.mxu0 0.0
  %814 = vmatpush1.msra.mxu0 0.0
  %815 = vmatprep.subr.mxu0 0.0
  %816 = vmatpush1.msra.mxu0 0.0
  %817 = vmatprep.subr.mxu0 0.0
  %818 = vmatpush1.msra.mxu0 0.0
  %819 = vmatprep.subr.mxu0 0.0
  %820 = vmatpush1.msra.mxu0 0.0
  %821 = vmatprep.subr.mxu0 0.0
  %822 = vmatpush1.msra.mxu0 0.0
  %823 = vmatprep.subr.mxu0 0.0
  %824 = vmatpush1.msra.mxu0 0.0
  %825 = vmatprep.subr.mxu0 0.0
  %826 = vmatpush1.msra.mxu0 0.0
  %827 = vmatprep.subr.mxu0 0.0
  %828 = vmatpush1.msra.mxu0 %v796
  %829 = vmatprep.subr.mxu0 0.0
  %830 = vmatpush1.msra.mxu0 %v795
  %831 = vmatprep.subr.mxu0 0.0
  %832 = vmatpush1.msra.mxu0 %v794
  %833 = vmatprep.subr.mxu0 0.0
  %834 = vmatpush1.msra.mxu0 %v793
  %835 = vmatprep.subr.mxu0 0.0
  %836 = vmatpush1.msra.mxu0 %v792
  %837 = vmatprep.subr.mxu0 0.0
  %838 = vmatpush1.msra.mxu0 %v791
  %839 = vmatprep.subr.mxu0 0.0
  %840 = vmatpush1.msra.mxu0 %v790
  %841 = vmatprep.subr.mxu0 0.0
  %842 = vmatpush1.msra.mxu0 %v789
  %843 = vmatprep.subr.mxu0 0.0
  %844 = vmatpush2.msra.mxu0 0.0
  %845 = vmatprep.subr.mxu0 0.0
  %846 = vmatpush2.msra.mxu0 0.0
  %847 = vmatprep.subr.mxu0 0.0
  %848 = vmatpush2.msra.mxu0 0.0
  %849 = vmatprep.subr.mxu0 0.0
  %850 = vmatpush2.msra.mxu0 0.0
  %851 = vmatprep.subr.mxu0 0.0
  %852 = vmatpush2.msra.mxu0 0.0
  %853 = vmatprep.subr.mxu0 0.0
  %854 = vmatpush2.msra.mxu0 0.0
  %855 = vmatprep.subr.mxu0 0.0
  %856 = vmatpush2.msra.mxu0 0.0
  %857 = vmatprep.subr.mxu0 0.0
  %858 = vmatpush2.msra.mxu0 0.0
  %859 = vmatprep.subr.mxu0 0.0
  %860 = vmatpush2.msra.mxu0 0.0
  %861 = vmatprep.subr.mxu0 0.0
  %862 = vmatpush2.msra.mxu0 0.0
  %863 = vmatprep.subr.mxu0 0.0
  %864 = vmatpush2.msra.mxu0 0.0
  %865 = vmatprep.subr.mxu0 0.0
  %866 = vmatpush2.msra.mxu0 0.0
  %867 = vmatprep.subr.mxu0 0.0
  %868 = vmatpush2.msra.mxu0 0.0
  %869 = vmatprep.subr.mxu0 0.0
  %870 = vmatpush2.msra.mxu0 0.0
  %871 = vmatprep.subr.mxu0 0.0
  %872 = vmatpush2.msra.mxu0 0.0
  %873 = vmatprep.subr.mxu0 0.0
  %874 = vmatpush2.msra.mxu0 0.0
  %875 = vmatprep.mubr.f32.mxu0 0.0
  %876 = vmatmul.mubr.f32.gmra.mxu0 %v806
  %v877 = vpop.f32.mrf.mxu0
  %v878 = vadd.f32 %v802, %v877
  %v879 = vpop.f32.mrf.mxu0
  %880 = vmatprep.mubr.f32.mxu0 0.0
  %881 = vmatmul.mubr.f32.gmra.mxu0 %v809
  %v882 = vpop.f32.mrf.mxu0
  %v883 = vadd.f32 %v802, %v882
  %v884 = vpop.f32.mrf.mxu0
  %885 = vdwg.mxu0
  %886 = vrot.lane.b32.xlu0 %v694, 32
  %v887 = vpop.permute.xlu0 %886
  %890 = vrot.lane.b32.xlu0 %v878, 64
  %v891 = vpop.permute.xlu0 %890
  %894 = vrot.lane.b32.xlu0 %v883, 96
  %v895 = vpop.permute.xlu0 %894
  %v897 = vsel %vm320, %v693, %v887
  %v898 = vsel %vm804, %v897, %v891
  %vm899 = vcmask 785408
  %v900 = vsel %vm899, %v898, %v895
  %901 = vst [vmem:[%s9] sm:$0xff] %v900
  // Predicated region
  $region38: #{smiles_siam_forward.1} parent=0 // pred_check
    _
  $region39: #{smiles_siam_forward.1} parent=0 // pred_check_branch
    %903 = sbr.rel (0) target = $region41
  $region40: #{smiles_siam_forward.1} parent=0 // pred_region
    _
  $region41: #{smiles_siam_forward.1} parent=0 // pred_fallthru
    _
  // Predicated region
  $region42: #{smiles_siam_forward.1} parent=0 // pred_check
    _
  $region43: #{smiles_siam_forward.1} parent=0 // pred_check_branch
    %905 = sbr.rel (0) target = $region45
  $region44: #{smiles_siam_forward.1} parent=0 // pred_region
    _
  $region45: #{smiles_siam_forward.1} parent=0 // pred_fallthru
    _

</llo_original>
